<compile_context>
chip_gen: v5e
topology: v5e:2x2
jax: 0.10.0
libtpu: 0.0.40
codegen_flags: <defaults>
</compile_context>

<pallas_src>
import jax
import jax.numpy as jnp
from jax.experimental import pallas as pl
from jax.experimental.pallas import tpu as pltpu


def _round_up(v, m):
    return ((v + m - 1) // m) * m


def _sig_tanh_gate_kernel(x_ref, y_ref, ws_ref, wt_ref, b_ref, o_ref):
    """Two-dot variant: separate W_sig.T / W_tanh.T blocks (also used when E_out is tiled)."""
    y_mm = y_ref[...].astype(ws_ref.dtype)          # single cast, reused by both dots
    z_s = jnp.dot(y_mm, ws_ref[...], preferred_element_type=jnp.float32) + b_ref[...]
    z_t = jnp.dot(y_mm, wt_ref[...], preferred_element_type=jnp.float32)
    out = x_ref[...].astype(jnp.float32) + jax.nn.sigmoid(z_s) * jnp.tanh(z_t)
    o_ref[...] = out.astype(o_ref.dtype)


def _sig_tanh_gate_kernel_fused(x_ref, y_ref, w_ref, b_ref, o_ref):
    """Fused variant: one (E, 2E) RHS = [W_sig.T | W_tanh.T]; single MXU stream per step."""
    n = o_ref.shape[-1]                              # == E; E % 128 == 0 on this path
    y_mm = y_ref[...].astype(w_ref.dtype)
    z = jnp.dot(y_mm, w_ref[...], preferred_element_type=jnp.float32)
    z_s = z[:, :n] + b_ref[...]
    z_t = z[:, n:]
    out = x_ref[...].astype(jnp.float32) + jax.nn.sigmoid(z_s) * jnp.tanh(z_t)
    o_ref[...] = out.astype(o_ref.dtype)


def sig_tanh_gate(x, y, w_sig, b_sig, w_tanh, *, tm=None, matmul_dtype=jnp.bfloat16):
    """out = x + sigmoid(y @ w_sig.T + b_sig) * tanh(y @ w_tanh.T).

    x, y: (..., E); w_sig, w_tanh: (E, E) [out, in] as in nn.Linear; b_sig: (E,).
    """
    orig_shape = x.shape
    E = orig_shape[-1]
    x2 = x.reshape(-1, E)
    y2 = y.reshape(-1, E)
    R = x2.shape[0]

    x_isz = jnp.dtype(x.dtype).itemsize
    w_isz = jnp.dtype(matmul_dtype).itemsize

    # Per-core VMEM budget (v5e/v6e = 128 MiB, v7x = 64 MiB).
    try:
        vmem_cap = int(pltpu.get_tpu_info().vmem_capacity_bytes)
    except Exception:
        vmem_cap = 64 << 20                          # conservative fallback
    budget = int(0.85 * vmem_cap)

    # Row tile: multiple of the sublane pack of the activation dtype; large row tiles
    # amortize per-grid-step overhead in the HBM-bound regime (E below ~1-2K).
    pack = {4: 8, 2: 16, 1: 32}.get(x_isz, 8)
    tm_target = tm if tm is not None else (512 if E <= 2048 else 256)
    tm = max(pack, min(_round_up(tm_target, pack), _round_up(R, pack)))

    def vmem_need(tm_, tn_, w_bufs):
        w = 2 * E * tn_ * w_isz * w_bufs             # two weight slabs
        b = max(tn_, 128) * 4 * w_bufs               # bias
        io = 2 * (2 * tm_ * tn_ * x_isz)             # x + out tiles, double-buffered
        yi = 2 * tm_ * E * x_isz                     # y tile, double-buffered
        f32 = 4 * tm_ * max(tn_, E) * 4              # in-kernel f32 intermediates
        return w + b + io + yi + f32

    # Prefer fully-resident, single-buffered weights; shrink tm first, then tile E_out.
    tn, w_bufs = E, 1
    while tm > pack and vmem_need(tm, tn, w_bufs) > budget:
        tm = max(pack, _round_up(tm // 2, pack))
    if vmem_need(tm, tn, w_bufs) > budget and E > 128:
        w_bufs = 2                                   # weight block index varies -> 2 buffers
        tn = max(128, 128 * ((E // 2) // 128))
        while tn > 128 and vmem_need(tm, tn, w_bufs) > budget:
            tn = max(128, _round_up(tn // 2, 128))

    # Keep the parallel row axis >= 2 steps when possible (v7x megacore balance).
    n_rows = pl.cdiv(R, tm)
    if n_rows == 1 and R > pack:
        tm = max(pack, _round_up(pl.cdiv(R, 2), pack))
        n_rows = pl.cdiv(R, tm)
    n_cols = pl.cdiv(E, tn)

    vmem_limit = int(min(budget, max(32 << 20, vmem_need(tm, tn, w_bufs) + (2 << 20))))

    # Weight prep: pre-transposed, matmul dtype. No wrapper-side activation casts.
    ws_t = w_sig.T.astype(matmul_dtype)              # (E_in, E_out)
    wt_t = w_tanh.T.astype(matmul_dtype)             # (E_in, E_out)
    b2 = b_sig.reshape(1, E).astype(jnp.float32)

    fused = (n_cols == 1) and (E % 128 == 0)
    # Constant-index blocks get a single VMEM buffer (halves weight residency).
    res = dict(pipeline_mode=pl.Buffered(1)) if n_cols == 1 else {}

    if fused:
        w_cat = jnp.concatenate([ws_t, wt_t], axis=1)            # (E, 2E)
        kernel = _sig_tanh_gate_kernel_fused
        operands = (x2, y2, w_cat, b2)
        in_specs = [
            pl.BlockSpec((tm, E), lambda i, j: (i, 0)),              # x row tile
            pl.BlockSpec((tm, E), lambda i, j: (i, 0)),              # y row tile
            pl.BlockSpec((E, 2 * E), lambda i, j: (0, 0), **res),    # [W_sig.T | W_tanh.T]
            pl.BlockSpec((1, E), lambda i, j: (0, 0), **res),        # bias
        ]
    else:
        kernel = _sig_tanh_gate_kernel
        operands = (x2, y2, ws_t, wt_t, b2)
        in_specs = [
            pl.BlockSpec((tm, tn), lambda i, j: (i, j)),             # x tile
            pl.BlockSpec((tm, E), lambda i, j: (i, 0)),              # y row tile (full K)
            pl.BlockSpec((E, tn), lambda i, j: (0, j), **res),       # W_sig.T block
            pl.BlockSpec((E, tn), lambda i, j: (0, j), **res),       # W_tanh.T block
            pl.BlockSpec((1, tn), lambda i, j: (0, j), **res),       # bias block
        ]

    cost = pl.CostEstimate(
        flops=4 * R * E * E,
        transcendentals=2 * R * E,
        bytes_accessed=3 * R * E * x_isz + 2 * E * E * w_isz + E * 4,
    )

    out = pl.pallas_call(
        kernel,
        out_shape=jax.ShapeDtypeStruct((R, E), x.dtype),
        grid_spec=pltpu.PrefetchScalarGridSpec(
            num_scalar_prefetch=0,
            grid=(n_rows, n_cols),
            in_specs=in_specs,
            out_specs=pl.BlockSpec((tm, tn), lambda i, j: (i, j)),
        ),
        compiler_params=pltpu.CompilerParams(
            dimension_semantics=("parallel", "arbitrary"),
            vmem_limit_bytes=vmem_limit),
        cost_estimate=cost,
    )(*operands)

    return out.reshape(orig_shape)


if __name__ == "__main__":
    def reference(x, y, w_sig, b_sig, w_tanh):
        return x + jax.nn.sigmoid(y @ w_sig.T + b_sig) * jnp.tanh(y @ w_tanh.T)

    key = jax.random.PRNGKey(0)

    # Case 1: E=32  -> two-dot path, fully-resident weights, 2-step row grid.
    # Case 2: E=128 -> fused single-dot path, ragged last row tile (R=40, tm=32).
    cases = [
        dict(B=2, S=8, E=32, tm=None),
        dict(B=2, S=20, E=128, tm=32),
    ]
    for c in cases:
        B, S, E, tm_arg = c["B"], c["S"], c["E"], c["tm"]
        k = jax.random.fold_in(key, E)
        kx, ky, kws, kwt = jax.random.split(k, 4)

        x = jax.random.normal(kx, (B, S, E), dtype=jnp.float32)
        y = jax.random.normal(ky, (B, S, E), dtype=jnp.float32)
        # nn.Linear(E, E): weight (E, E); sigmoid bias filled with -1.0; tanh has no bias.
        w_sig = jax.random.normal(kws, (E, E), dtype=jnp.float32) * (E ** -0.5)
        b_sig = jnp.full((E,), -1.0, dtype=jnp.float32)
        w_tanh = jax.random.normal(kwt, (E, E), dtype=jnp.float32) * (E ** -0.5)

        ref = reference(x, y, w_sig, b_sig, w_tanh)

        # 1) f32 matmul path: tight tolerance.
        out_f32 = sig_tanh_gate(x, y, w_sig, b_sig, w_tanh, tm=tm_arg,
                                matmul_dtype=jnp.float32)
        jax.block_until_ready(out_f32)
        assert out_f32.shape == x.shape
        assert jnp.allclose(out_f32, ref, atol=1e-4, rtol=1e-4), \
            f"f32 kernel mismatch vs reference (E={E})"

        # 2) bf16 matmul / f32 accumulation path (default): relaxed tolerance.
        out_bf16 = sig_tanh_gate(x, y, w_sig, b_sig, w_tanh, tm=tm_arg)
        jax.block_until_ready(out_bf16)
        assert jnp.allclose(out_bf16, ref, atol=5e-2, rtol=5e-2), \
            f"bf16 kernel mismatch vs reference (E={E})"

    print("KERNEL_OK")
</pallas_src>

<mosaic_0001>
module attributes {stable_mosaic.version = 11 : i64} {
  func.func @_sig_tanh_gate_kernel(%arg0: i32, %arg1: i32, %arg2: memref<8x32xf32, #tpu.memory_space<vmem>>, %arg3: memref<8x32xf32, #tpu.memory_space<vmem>>, %arg4: memref<32x32xf32, #tpu.memory_space<vmem>>, %arg5: memref<32x32xf32, #tpu.memory_space<vmem>>, %arg6: memref<1x32xf32, #tpu.memory_space<vmem>>, %arg7: memref<8x32xf32, #tpu.memory_space<vmem>>) attributes {dimension_semantics = [#tpu.dimension_semantics<parallel>, #tpu.dimension_semantics<arbitrary>], iteration_bounds = array<i64: 2, 1>, scalar_prefetch = 0 : i64, scratch_operands = 0 : i64, tpu.core_type = #tpu.core_type<tc>, window_params = [{transform_indices = @transform_0, window_bounds = array<i64: 8, 32>}, {transform_indices = @transform_1, window_bounds = array<i64: 8, 32>}, {pipeline_mode = #tpu.pipeline_mode<synchronous>, transform_indices = @transform_2, window_bounds = array<i64: 32, 32>}, {pipeline_mode = #tpu.pipeline_mode<synchronous>, transform_indices = @transform_3, window_bounds = array<i64: 32, 32>}, {pipeline_mode = #tpu.pipeline_mode<synchronous>, transform_indices = @transform_4, window_bounds = array<i64: 1, 32>}, {transform_indices = @transform_5, window_bounds = array<i64: 8, 32>}]} {
    %c0 = arith.constant 0 : index
    %c0_0 = arith.constant 0 : index
    %0 = vector.load %arg3[%c0, %c0_0] : memref<8x32xf32, #tpu.memory_space<vmem>>, vector<8x32xf32>
    %c0_1 = arith.constant 0 : index
    %c0_2 = arith.constant 0 : index
    %1 = vector.load %arg4[%c0_1, %c0_2] : memref<32x32xf32, #tpu.memory_space<vmem>>, vector<32x32xf32>
    %cst = arith.constant dense<0.000000e+00> : vector<8x32xf32>
    %2 = tpu.matmul %0, %1, %cst {dimension_numbers = #tpu.dot_dimension_numbers<[1], [0], [0], [1], [0, 0, 1, 1], [], []>} : vector<8x32xf32>, vector<32x32xf32>, vector<8x32xf32> -> vector<8x32xf32>
    %c0_3 = arith.constant 0 : index
    %c0_4 = arith.constant 0 : index
    %3 = vector.load %arg6[%c0_3, %c0_4] : memref<1x32xf32, #tpu.memory_space<vmem>>, vector<1x32xf32>
    %4 = vector.broadcast %3 : vector<1x32xf32> to vector<8x32xf32>
    %5 = arith.addf %2, %4 : vector<8x32xf32>
    %c0_5 = arith.constant 0 : index
    %c0_6 = arith.constant 0 : index
    %6 = vector.load %arg5[%c0_5, %c0_6] : memref<32x32xf32, #tpu.memory_space<vmem>>, vector<32x32xf32>
    %cst_7 = arith.constant dense<0.000000e+00> : vector<8x32xf32>
    %7 = tpu.matmul %0, %6, %cst_7 {dimension_numbers = #tpu.dot_dimension_numbers<[1], [0], [0], [1], [0, 0, 1, 1], [], []>} : vector<8x32xf32>, vector<32x32xf32>, vector<8x32xf32> -> vector<8x32xf32>
    %c0_8 = arith.constant 0 : index
    %c0_9 = arith.constant 0 : index
    %8 = vector.load %arg2[%c0_8, %c0_9] : memref<8x32xf32, #tpu.memory_space<vmem>>, vector<8x32xf32>
    %9 = arith.negf %5 : vector<8x32xf32>
    %10 = math.exp %9 : vector<8x32xf32>
    %cst_10 = arith.constant 1.000000e+00 : f32
    %11 = vector.broadcast %cst_10 : f32 to vector<8x32xf32>
    %12 = arith.addf %11, %10 : vector<8x32xf32>
    %13 = arith.divf %11, %12 : vector<8x32xf32>
    %14 = math.tanh %7 : vector<8x32xf32>
    %15 = arith.mulf %13, %14 : vector<8x32xf32>
    %16 = arith.addf %8, %15 : vector<8x32xf32>
    %c0_11 = arith.constant 0 : index
    %c0_12 = arith.constant 0 : index
    %17 = vector.load %arg7[%c0_11, %c0_12] : memref<8x32xf32, #tpu.memory_space<vmem>>, vector<8x32xf32>
    tpu.vector_store %arg7[%c0_11, %c0_12], %16 {strides = array<i32>} : memref<8x32xf32, #tpu.memory_space<vmem>>, vector<8x32xf32>,
    return
  }
  func.func @transform_0(%arg0: i32, %arg1: i32) -> (i32, i32) {
    %c0_i32 = arith.constant 0 : i32
    return %arg0, %arg1 : i32, i32
  }
  func.func @transform_1(%arg0: i32, %arg1: i32) -> (i32, i32) {
    %c0_i32 = arith.constant 0 : i32
    %c0_i32_0 = arith.constant 0 : i32
    return %arg0, %c0_i32 : i32, i32
  }
  func.func @transform_2(%arg0: i32, %arg1: i32) -> (i32, i32) {
    %c0_i32 = arith.constant 0 : i32
    %c0_i32_0 = arith.constant 0 : i32
    return %c0_i32, %arg1 : i32, i32
  }
  func.func @transform_3(%arg0: i32, %arg1: i32) -> (i32, i32) {
    %c0_i32 = arith.constant 0 : i32
    %c0_i32_0 = arith.constant 0 : i32
    return %c0_i32, %arg1 : i32, i32
  }
  func.func @transform_4(%arg0: i32, %arg1: i32) -> (i32, i32) {
    %c0_i32 = arith.constant 0 : i32
    %c0_i32_0 = arith.constant 0 : i32
    return %c0_i32, %arg1 : i32, i32
  }
  func.func @transform_5(%arg0: i32, %arg1: i32) -> (i32, i32) {
    %c0_i32 = arith.constant 0 : i32
    return %arg0, %arg1 : i32, i32
  }
}

</mosaic_0001>

<llo_original>
// kernel: tpu_custom_call.1
$region0: #{tpu_custom_call.1}
  #allocation0 [shape = 'u32[]', space=smem, size = 0x4, offset = 0x4, fixed_abs, tag = 'smem constant byte address 0x4 - core index']
  #allocation1 [shape = 'u32[72,128]{1,0:T(1,128)}', space=vmem, size = 0x9000, scoped, tag = 'internal scratch']
  %s0 = inlined_call_operand.hbm [shape: f32[16,32], index: 0, kind: input, shape index: {}]
  %s1 = inlined_call_operand.hbm [shape: f32[16,32], index: 1, kind: input, shape index: {}]
  %s2 = inlined_call_operand.hbm [shape: f32[32,32], index: 2, kind: input, shape index: {}]
  %s3 = inlined_call_operand.hbm [shape: f32[32,32], index: 3, kind: input, shape index: {}]
  %s4 = inlined_call_operand.vmem [shape: f32[1,32], index: 4, kind: input, shape index: {}]
  %s5 = inlined_call_operand.hbm [shape: f32[16,32], index: 5, kind: output, shape index: {}]
  %s6 = sld [smem:[#allocation0]]
  $region69: #{tpu_custom_call.1} parent=0
    _
  %s8 = ssub.s32 1, %s6
  %s9 = scalar_select 0, %s8, %s6
  $region1: #{tpu_custom_call.1} parent=0
    #allocation2 [shape = 'u8[8192]{0}', space=vmem, size = 0x2000, scoped, tag = 'input window, operand 0']
    #allocation3 [shape = 's32[2]{0}', space=sflag, size = 0x8, scoped, tag = 'scoped memory for tpu_custom_call.1']
    #allocation4 [shape = 's32[2]{0}', space=sflag, size = 0x8, scoped, tag = 'scoped memory for tpu_custom_call.1']
    #allocation5 [shape = 'u8[8192]{0}', space=vmem, size = 0x2000, scoped, tag = 'input window, operand 1']
    #allocation6 [shape = 's32[2]{0}', space=sflag, size = 0x8, scoped, tag = 'scoped memory for tpu_custom_call.1']
    #allocation7 [shape = 'u8[16384]{0}', space=vmem, size = 0x4000, scoped, tag = 'input window, operand 2, single buffered']
    #allocation8 [shape = 'u8[16384]{0}', space=vmem, size = 0x4000, scoped, tag = 'input window, operand 3, single buffered']
    #allocation9 [shape = 's32[1]{0}', space=sflag, size = 0x4, scoped, tag = 'scoped memory for tpu_custom_call.1']
    #allocation10 [shape = 'u8[8192]{0}', space=vmem, size = 0x2000, scoped, tag = 'output window, operand 0']
    %10 = vsyncpa [#allocation3], 0
    %s11 = scalar_lea.sflag [#allocation3], 1
    %12 = vsyncpa %s11, 0
    %13 = vsyncpa [#allocation6], 0
    %s14 = scalar_lea.sflag [#allocation6], 1
    %15 = vsyncpa %s14, 0
    %16 = vsyncpa [#allocation9], 0
    %17 = vsyncpa [#allocation4], 0
    %s18 = scalar_lea.sflag [#allocation4], 1
    %19 = vsyncpa %s18, 0
    loop: start=0, step=1, limit=4
    $region2: #{tpu_custom_call.1} parent=1 // loop_pre_header
      _
    $region3: #{tpu_custom_call.1} parent=1 // loop_header
      %s21 = sphi 0, %s25
      %p22 = scmp.ge.s32.totalorder %s21, 4
      %s28 = sphi 0, %s40
      %s29 = sphi 0, %s36
      %s30 = sphi 0, %s28
      %s31 = sphi 0, %s29
      %s32 = sphi 0, %s30
      %s33 = sphi 0, %s31
      %s45 = sphi 0, %s47
      %s48 = sphi 0, %s45
      %s49 = sphi 0, %s48
      %s65 = sphi 0, %s49
      %s71 = sphi 0, %s73
      %s74 = sphi 0, %s71
      %s75 = sphi 0, %s74
      %s91 = sphi 0, %s75
      %s97 = sphi 0, %s99
      %s100 = sphi 0, %s97
      %s101 = sphi 0, %s100
      %s117 = sphi 0, %s101
      %s123 = sphi 0, %s125
      %s126 = sphi 0, %s123
      %s127 = sphi 0, %s126
      %s143 = sphi 0, %s127
      %s149 = sphi 0, %s151
      %s152 = sphi 0, %s149
      %s153 = sphi 0, %s152
      %s169 = sphi 0, %s153
      %s177 = sphi 0, %s179
      %s180 = sphi 0, %s177
      %s181 = sphi 0, %s180
      %s197 = sphi 0, %s181
    $region4: #{tpu_custom_call.1} parent=1 // loop_header_branch
      %24 = sbr.rel (%p22) target = $region8
    $region5: #{tpu_custom_call.1} parent=1 // loop_body
      %s26 = ssub.s32 %s21, 1
      %s27 = ssub.s32 %s21, 2
      %s34 = sadd.s32 1, %s29
      %p35 = scmp.ge.s32.totalorder %s34, 1
      %s36 = scalar_select %p35, 0, %s34
      %s37 = sadd.s32 1, %s28
      %s38 = scalar_select %p35, %s37, %s28
      %p39 = scmp.ge.s32.totalorder %s38, 2
      %s40 = scalar_select %p39, 0, %s38
      %s41 = ssub.s32 %s28, %s40
      %s42 = ssub.s32 %s29, %s36
      %s43 = sor.u32 %s41, %s42
      %p44 = scmp.eq.s32.totalorder %s43, 0
      %s46 = sadd.s32 %s45, 1
      %s47 = scalar_select %p44, %s45, %s46
      %p50 = pneg %p44
      %p51 = scmp.eq.s32.totalorder %s21, 1
      %p52 = por %p50, %p51
      %p53 = scmp.ne.s32.totalorder %s45, %s48
      %p54 = scmp.eq.s32.totalorder %s21, 0
      %p55 = por %p53, %p54
      %p56 = scmp.ne.s32.totalorder %s45, %s48
      %p57 = scmp.eq.s32.totalorder %s26, 1
      %p58 = por %p56, %p57
      %p59 = scmp.ne.s32.totalorder %s48, %s49
      %p60 = scmp.eq.s32.totalorder %s26, 0
      %p61 = por %p59, %p60
      %p62 = scmp.ne.s32.totalorder %s48, %s49
      %p63 = scmp.eq.s32.totalorder %s27, 1
      %p64 = por %p62, %p63
      %p66 = scmp.ne.s32.totalorder %s49, %s65
      %p67 = scmp.eq.s32.totalorder %s27, 0
      %p68 = por %p66, %p67
      %s69 = ssub.s32 %s28, %s40
      %p70 = scmp.eq.s32.totalorder %s69, 0
      %s72 = sadd.s32 %s71, 1
      %s73 = scalar_select %p70, %s71, %s72
      %p76 = pneg %p70
      %p77 = scmp.eq.s32.totalorder %s21, 1
      %p78 = por %p76, %p77
      %p79 = scmp.ne.s32.totalorder %s71, %s74
      %p80 = scmp.eq.s32.totalorder %s21, 0
      %p81 = por %p79, %p80
      %p82 = scmp.ne.s32.totalorder %s71, %s74
      %p83 = scmp.eq.s32.totalorder %s26, 1
      %p84 = por %p82, %p83
      %p85 = scmp.ne.s32.totalorder %s74, %s75
      %p86 = scmp.eq.s32.totalorder %s26, 0
      %p87 = por %p85, %p86
      %p88 = scmp.ne.s32.totalorder %s74, %s75
      %p89 = scmp.eq.s32.totalorder %s27, 1
      %p90 = por %p88, %p89
      %p92 = scmp.ne.s32.totalorder %s75, %s91
      %p93 = scmp.eq.s32.totalorder %s27, 0
      %p94 = por %p92, %p93
      %s95 = ssub.s32 %s29, %s36
      %p96 = scmp.eq.s32.totalorder %s95, 0
      %s98 = sadd.s32 %s97, 1
      %s99 = scalar_select %p96, %s97, %s98
      %p102 = pneg %p96
      %p103 = scmp.eq.s32.totalorder %s21, 1
      %p104 = por %p102, %p103
      %p105 = scmp.ne.s32.totalorder %s97, %s100
      %p106 = scmp.eq.s32.totalorder %s21, 0
      %p107 = por %p105, %p106
      %p108 = scmp.ne.s32.totalorder %s97, %s100
      %p109 = scmp.eq.s32.totalorder %s26, 1
      %p110 = por %p108, %p109
      %p111 = scmp.ne.s32.totalorder %s100, %s101
      %p112 = scmp.eq.s32.totalorder %s26, 0
      %p113 = por %p111, %p112
      %p114 = scmp.ne.s32.totalorder %s100, %s101
      %p115 = scmp.eq.s32.totalorder %s27, 1
      %p116 = por %p114, %p115
      %p118 = scmp.ne.s32.totalorder %s101, %s117
      %p119 = scmp.eq.s32.totalorder %s27, 0
      %p120 = por %p118, %p119
      %s121 = ssub.s32 %s29, %s36
      %p122 = scmp.eq.s32.totalorder %s121, 0
      %s124 = sadd.s32 %s123, 1
      %s125 = scalar_select %p122, %s123, %s124
      %p128 = pneg %p122
      %p129 = scmp.eq.s32.totalorder %s21, 1
      %p130 = por %p128, %p129
      %p131 = scmp.ne.s32.totalorder %s123, %s126
      %p132 = scmp.eq.s32.totalorder %s21, 0
      %p133 = por %p131, %p132
      %p134 = scmp.ne.s32.totalorder %s123, %s126
      %p135 = scmp.eq.s32.totalorder %s26, 1
      %p136 = por %p134, %p135
      %p137 = scmp.ne.s32.totalorder %s126, %s127
      %p138 = scmp.eq.s32.totalorder %s26, 0
      %p139 = por %p137, %p138
      %p140 = scmp.ne.s32.totalorder %s126, %s127
      %p141 = scmp.eq.s32.totalorder %s27, 1
      %p142 = por %p140, %p141
      %p144 = scmp.ne.s32.totalorder %s127, %s143
      %p145 = scmp.eq.s32.totalorder %s27, 0
      %p146 = por %p144, %p145
      %s147 = ssub.s32 %s29, %s36
      %p148 = scmp.eq.s32.totalorder %s147, 0
      %s150 = sadd.s32 %s149, 1
      %s151 = scalar_select %p148, %s149, %s150
      %p154 = pneg %p148
      %p155 = scmp.eq.s32.totalorder %s21, 1
      %p156 = por %p154, %p155
      %p157 = scmp.ne.s32.totalorder %s149, %s152
      %p158 = scmp.eq.s32.totalorder %s21, 0
      %p159 = por %p157, %p158
      %p160 = scmp.ne.s32.totalorder %s149, %s152
      %p161 = scmp.eq.s32.totalorder %s26, 1
      %p162 = por %p160, %p161
      %p163 = scmp.ne.s32.totalorder %s152, %s153
      %p164 = scmp.eq.s32.totalorder %s26, 0
      %p165 = por %p163, %p164
      %p166 = scmp.ne.s32.totalorder %s152, %s153
      %p167 = scmp.eq.s32.totalorder %s27, 1
      %p168 = por %p166, %p167
      %p170 = scmp.ne.s32.totalorder %s153, %s169
      %p171 = scmp.eq.s32.totalorder %s27, 0
      %p172 = por %p170, %p171
      %s173 = ssub.s32 %s28, %s40
      %s174 = ssub.s32 %s29, %s36
      %s175 = sor.u32 %s173, %s174
      %p176 = scmp.eq.s32.totalorder %s175, 0
      %s178 = sadd.s32 %s177, 1
      %s179 = scalar_select %p176, %s177, %s178
      %p182 = pneg %p176
      %p183 = scmp.eq.s32.totalorder %s21, 1
      %p184 = por %p182, %p183
      %p185 = scmp.ne.s32.totalorder %s177, %s180
      %p186 = scmp.eq.s32.totalorder %s21, 0
      %p187 = por %p185, %p186
      %p188 = scmp.ne.s32.totalorder %s177, %s180
      %p189 = scmp.eq.s32.totalorder %s26, 1
      %p190 = por %p188, %p189
      %p191 = scmp.ne.s32.totalorder %s180, %s181
      %p192 = scmp.eq.s32.totalorder %s26, 0
      %p193 = por %p191, %p192
      %p194 = scmp.ne.s32.totalorder %s180, %s181
      %p195 = scmp.eq.s32.totalorder %s27, 1
      %p196 = por %p194, %p195
      %p198 = scmp.ne.s32.totalorder %s181, %s197
      %p199 = scmp.eq.s32.totalorder %s27, 0
      %p200 = por %p198, %p199
      %p201 = scmp.le.s32.totalorder 1, %s21
      %p202 = scmp.lt.s32.totalorder %s21, 3
      %p203 = pnand %p201, %p202
      %p204 = pneg %p203
      // Predicated region
      $region9: #{tpu_custom_call.1} parent=5 // pred_check
        _
      $region10: #{tpu_custom_call.1} parent=5 // pred_check_branch
        %206 = sbr.rel (%p203) target = $region12
      $region11: #{tpu_custom_call.1} parent=5 // pred_region
        %s207 = ssub.s32 %s21, 1
        // Predicated region
        $region13: #{tpu_custom_call.1} parent=11 // pred_check
          %p208 = pneg %p113
        $region14: #{tpu_custom_call.1} parent=11 // pred_check_branch
          %210 = sbr.rel (%p208) target = $region16
        $region15: #{tpu_custom_call.1} parent=11 // pred_region
          %212 = vsyncadd [#allocation6], 0
          %s213 = smul.addr %s31, 8
          %s214 = scalar_lea.hbm %s2, %s213
          %s215 = sshll.u32 %s214, 4
          %s216 = int_to_ptr.hbm [resolvable:$true] %s215
          %s217 = sshll.u32 [#allocation7], 4
          %s218 = int_to_ptr.vmem [resolvable:$true] %s217
          %223 = dma.hbm_to_vmem [thread:$0]  %s216, 512, %s218, [#allocation6], 128, 128, 8
        $region16: #{tpu_custom_call.1} parent=11 // pred_fallthru
          _
        // Predicated region
        $region17: #{tpu_custom_call.1} parent=11 // pred_check
          %p224 = pneg %p139
        $region18: #{tpu_custom_call.1} parent=11 // pred_check_branch
          %226 = sbr.rel (%p224) target = $region20
        $region19: #{tpu_custom_call.1} parent=11 // pred_region
          %228 = vsyncadd [#allocation9], 0
          %s229 = smul.addr %s31, 8
          %s230 = scalar_lea.hbm %s3, %s229
          %s231 = sshll.u32 %s230, 4
          %s232 = int_to_ptr.hbm [resolvable:$true] %s231
          %s233 = sshll.u32 [#allocation8], 4
          %s234 = int_to_ptr.vmem [resolvable:$true] %s233
          %239 = dma.hbm_to_vmem [thread:$0]  %s232, 512, %s234, [#allocation9], 128, 128, 8
        $region20: #{tpu_custom_call.1} parent=11 // pred_fallthru
          _
        // Predicated region
        $region21: #{tpu_custom_call.1} parent=11 // pred_check
          %p240 = pneg %p165
        $region22: #{tpu_custom_call.1} parent=11 // pred_check_branch
          %242 = sbr.rel (%p240) target = $region24
        $region23: #{tpu_custom_call.1} parent=11 // pred_region
          %p243 = scmp.lt.s32.totalorder %s31, 0
          %s244 = scalar_select %p243, %s31, 0
          %s245 = scalar_lea.vmem %s4, %s244
        $region24: #{tpu_custom_call.1} parent=11 // pred_fallthru
          _
      $region12: #{tpu_custom_call.1} parent=5 // pred_fallthru
        _
      %p246 = scmp.lt.s32.totalorder %s21, 2
      // Predicated region
      $region25: #{tpu_custom_call.1} parent=5 // pred_check
        %p247 = pneg %p246
      $region26: #{tpu_custom_call.1} parent=5 // pred_check_branch
        %249 = sbr.rel (%p247) target = $region28
      $region27: #{tpu_custom_call.1} parent=5 // pred_region
        // Predicated region
        $region29: #{tpu_custom_call.1} parent=27 // pred_check
          %p250 = pneg %p55
        $region30: #{tpu_custom_call.1} parent=27 // pred_check_branch
          %252 = sbr.rel (%p250) target = $region32
        $region31: #{tpu_custom_call.1} parent=27 // pred_region
          %s253 = sand.u32 %s45, 1
          %s254 = scalar_lea.sflag [#allocation3], %s253
          %s255 = sand.u32 %s45, 1
          %s256 = smul.addr %s255, 8
          %s257 = scalar_lea.vmem [#allocation2], %s256
          %259 = vsyncadd %s254, 0
          %s260 = sadd.s32 %s29, %s28
          %s261 = smul.addr %s260, 8
          %s262 = scalar_lea.hbm %s0, %s261
          %s264 = sshll.u32 %s262, 4
          %s265 = int_to_ptr.hbm [resolvable:$true] %s264
          %s266 = sshll.u32 %s257, 4
          %s267 = int_to_ptr.vmem [resolvable:$true] %s266
          %269 = dma.hbm_to_vmem [thread:$0]  %s265, 128, %s267, %s254
        $region32: #{tpu_custom_call.1} parent=27 // pred_fallthru
          _
        // Predicated region
        $region33: #{tpu_custom_call.1} parent=27 // pred_check
          %p270 = pneg %p81
        $region34: #{tpu_custom_call.1} parent=27 // pred_check_branch
          %272 = sbr.rel (%p270) target = $region36
        $region35: #{tpu_custom_call.1} parent=27 // pred_region
          %s273 = sand.u32 %s21, 1
          %s274 = scalar_lea.sflag [#allocation6], %s273
          %s275 = sand.u32 %s71, 1
          %s276 = smul.addr %s275, 8
          %s277 = scalar_lea.vmem [#allocation5], %s276
          %279 = vsyncadd %s274, 0
          %s280 = smul.addr %s28, 8
          %s281 = scalar_lea.hbm %s1, %s280
          %s283 = sshll.u32 %s281, 4
          %s284 = int_to_ptr.hbm [resolvable:$true] %s283
          %s285 = sshll.u32 %s277, 4
          %s286 = int_to_ptr.vmem [resolvable:$true] %s285
          %288 = dma.hbm_to_vmem [thread:$0]  %s284, 128, %s286, %s274
        $region36: #{tpu_custom_call.1} parent=27 // pred_fallthru
          _
      $region28: #{tpu_custom_call.1} parent=5 // pred_fallthru
        _
      %p289 = scmp.le.s32.totalorder 1, %s21
      %p290 = scmp.lt.s32.totalorder %s21, 3
      %p291 = pnand %p289, %p290
      %p292 = pneg %p291
      // Predicated region
      $region37: #{tpu_custom_call.1} parent=5 // pred_check
        _
      $region38: #{tpu_custom_call.1} parent=5 // pred_check_branch
        %294 = sbr.rel (%p291) target = $region40
      $region39: #{tpu_custom_call.1} parent=5 // pred_region
        %s295 = ssub.s32 %s21, 1
        %s296 = sand.u32 %s48, 1
        %s297 = scalar_lea.sflag [#allocation3], %s296
        %s298 = sand.u32 %s48, 1
        %s299 = smul.addr %s298, 8
        %s300 = scalar_lea.vmem [#allocation2], %s299
        // Predicated region
        $region41: #{tpu_custom_call.1} parent=39 // pred_check
          %p301 = pneg %p61
        $region42: #{tpu_custom_call.1} parent=39 // pred_check_branch
          %303 = sbr.rel (%p301) target = $region44
        $region43: #{tpu_custom_call.1} parent=39 // pred_region
          %305 = dma.done %s297, 128
        $region44: #{tpu_custom_call.1} parent=39 // pred_fallthru
          _
        %s306 = sand.u32 %s26, 1
        %s307 = scalar_lea.sflag [#allocation6], %s306
        %s308 = sand.u32 %s74, 1
        %s309 = smul.addr %s308, 8
        %s310 = scalar_lea.vmem [#allocation5], %s309
        // Predicated region
        $region45: #{tpu_custom_call.1} parent=39 // pred_check
          %p311 = pneg %p87
        $region46: #{tpu_custom_call.1} parent=39 // pred_check_branch
          %313 = sbr.rel (%p311) target = $region48
        $region47: #{tpu_custom_call.1} parent=39 // pred_region
          %315 = dma.done %s307, 128
        $region48: #{tpu_custom_call.1} parent=39 // pred_fallthru
          _
        // Predicated region
        $region49: #{tpu_custom_call.1} parent=39 // pred_check
          %p316 = pneg %p113
        $region50: #{tpu_custom_call.1} parent=39 // pred_check_branch
          %318 = sbr.rel (%p316) target = $region52
        $region51: #{tpu_custom_call.1} parent=39 // pred_region
          %320 = dma.done [#allocation6], 512
        $region52: #{tpu_custom_call.1} parent=39 // pred_fallthru
          _
        // Predicated region
        $region53: #{tpu_custom_call.1} parent=39 // pred_check
          %p321 = pneg %p139
        $region54: #{tpu_custom_call.1} parent=39 // pred_check_branch
          %323 = sbr.rel (%p321) target = $region56
        $region55: #{tpu_custom_call.1} parent=39 // pred_region
          %325 = dma.done [#allocation9], 512
        $region56: #{tpu_custom_call.1} parent=39 // pred_fallthru
          _
        %s326 = sand.u32 %s48, 1
        %s327 = scalar_lea.sflag [#allocation3], %s326
        %s328 = sand.u32 %s48, 1
        %s329 = smul.addr %s328, 8
        %s330 = scalar_lea.vmem [#allocation2], %s329
        %p331 = pneg %p61
        %p332 = pneg %p58
        %s333 = sand.u32 %s26, 1
        %s334 = scalar_lea.sflag [#allocation6], %s333
        %s335 = sand.u32 %s74, 1
        %s336 = smul.addr %s335, 8
        %s337 = scalar_lea.vmem [#allocation5], %s336
        %p338 = pneg %p87
        %p339 = pneg %p84
        %p340 = pneg %p113
        %p341 = pneg %p110
        %p342 = pneg %p139
        %p343 = pneg %p136
        %p344 = scmp.lt.s32.totalorder %s31, 0
        %s345 = scalar_select %p344, %s31, 0
        %s346 = scalar_lea.vmem %s4, %s345
        %p347 = pneg %p165
        %p348 = pneg %p162
        %p349 = pneg %p193
        %p350 = pneg %p190
        %s351 = sand.u32 %s180, 1
        %s352 = scalar_lea.sflag [#allocation4], %s351
        %s353 = sand.u32 %s180, 1
        %s354 = smul.addr %s353, 8
        %s355 = scalar_lea.vmem [#allocation10], %s354
        %p356 = scmp.lt.s32.totalorder %s31, 0
        %s357 = scalar_select %p356, %s31, 0
        %s358 = scalar_lea.vmem %s4, %s357
        %v359 = vld [vmem:[%s310] sm:$0xff]
        %v360 = vld [vmem:[#allocation7] sm:$0xff]
        %v361 = vld [vmem:[#allocation7 + $0x8] sm:$0xff]
        %v362 = vld [vmem:[#allocation7 + $0x10] sm:$0xff]
        %v363 = vld [vmem:[#allocation7 + $0x18] sm:$0xff]
        %v364 = vld [vmem:[%s358] sm:$0x1]
        %v366 = vperm.slane %v364, 0
        %vm368 = vcmask 261120
        %v370 = vsel %vm368, %v359, 0
        %372 = vmatpush.msra.mxu0 0.0
        %373 = vmatpush.msra.mxu0 0.0
        %374 = vmatpush.msra.mxu0 0.0
        %375 = vmatpush.msra.mxu0 0.0
        %376 = vmatpush.msra.mxu0 0.0
        %377 = vmatpush.msra.mxu0 0.0
        %378 = vmatpush.msra.mxu0 0.0
        %379 = vmatpush.msra.mxu0 0.0
        %380 = vmatpush.msra.mxu0 0.0
        %381 = vmatpush.msra.mxu0 0.0
        %382 = vmatpush.msra.mxu0 0.0
        %383 = vmatpush.msra.mxu0 0.0
        %384 = vmatpush.msra.mxu0 %v363
        %385 = vmatpush.msra.mxu0 %v362
        %386 = vmatpush.msra.mxu0 %v361
        %387 = vmatpush.msra.mxu0 %v360
        %388 = vmatmul.f32.gmra.mxu0 %v370
        %v389 = vpop.f32.mrf.mxu0
        %v390 = vadd.f32 %v366, %v389
        %391 = vdwg.mxu0
        %v392 = vld [vmem:[#allocation8] sm:$0xff]
        %v393 = vld [vmem:[#allocation8 + $0x8] sm:$0xff]
        %v394 = vld [vmem:[#allocation8 + $0x10] sm:$0xff]
        %v395 = vld [vmem:[#allocation8 + $0x18] sm:$0xff]
        %396 = vmatpush.msra.mxu0 0.0
        %397 = vmatpush.msra.mxu0 0.0
        %398 = vmatpush.msra.mxu0 0.0
        %399 = vmatpush.msra.mxu0 0.0
        %400 = vmatpush.msra.mxu0 0.0
        %401 = vmatpush.msra.mxu0 0.0
        %402 = vmatpush.msra.mxu0 0.0
        %403 = vmatpush.msra.mxu0 0.0
        %404 = vmatpush.msra.mxu0 0.0
        %405 = vmatpush.msra.mxu0 0.0
        %406 = vmatpush.msra.mxu0 0.0
        %407 = vmatpush.msra.mxu0 0.0
        %408 = vmatpush.msra.mxu0 %v395
        %409 = vmatpush.msra.mxu0 %v394
        %410 = vmatpush.msra.mxu0 %v393
        %411 = vmatpush.msra.mxu0 %v392
        %412 = vmatmul.f32.gmra.mxu0 %v370
        %v413 = vpop.f32.mrf.mxu0
        %v414 = vadd.f32 0.0, %v413
        %415 = vdwg.mxu0
        %v416 = vld [vmem:[%s300] sm:$0xff]
        %v417 = vxor.u32 %v390, 2147483648
        %v418 = vmul.f32 %v417, 1.442695
        %v419 = vpow.pop %v418
        %v420 = vadd.f32 %v419, 1.0
        %v421 = vrcp.pop %v420
        %v422 = vmul.f32 %v420, %v421
        %v423 = vsub.f32 1.0, %v422
        %v424 = vmul.f32 %v421, %v423
        %v425 = vadd.f32 %v421, %v424
        %vm426 = vweird.f32 %v420
        %vm427 = vweird.f32 %v421
        %vm428 = vmor %vm426, %vm427
        %v429 = vsel %vm428, %v421, %v425
        %v430 = vand.u32 2147483647, %v420
        %vm431 = vcmp.eq.f32.partialorder %v430, 8.507059e+37
        %v432 = vand.u32 %v420, 2147483648
        %v433 = vor.u32 1.1754944e-38, %v432
        %v434 = vsel %vm431, %v433, %v429
        %v435 = vmul.f32 1.0, %v434
        %v436 = vtanh.pop %v414
        %v437 = vmul.f32 %v435, %v436
        %v438 = vadd.f32 %v416, %v437
        %439 = vst.msk [vmem:[%s355] sm:$0xff] %vm368, %v438
        %s440 = sand.u32 %s180, 1
        %s441 = scalar_lea.sflag [#allocation4], %s440
        %s442 = sand.u32 %s180, 1
        %s443 = smul.addr %s442, 8
        %s444 = scalar_lea.vmem [#allocation10], %s443
        // Predicated region
        $region57: #{tpu_custom_call.1} parent=39 // pred_check
          %p445 = pneg %p190
        $region58: #{tpu_custom_call.1} parent=39 // pred_check_branch
          %447 = sbr.rel (%p445) target = $region60
        $region59: #{tpu_custom_call.1} parent=39 // pred_region
          %449 = vsyncadd %s441, 0
          %s450 = sadd.s32 %s31, %s30
          %s451 = smul.addr %s450, 8
          %s452 = scalar_lea.hbm %s5, %s451
          %s454 = sshll.u32 %s444, 4
          %s455 = int_to_ptr.vmem [resolvable:$true] %s454
          %s456 = sshll.u32 %s452, 4
          %s457 = int_to_ptr.hbm [resolvable:$true] %s456
          %459 = dma.vmem_to_hbm [thread:$0]  %s455, 128, %s457, %s441
        $region60: #{tpu_custom_call.1} parent=39 // pred_fallthru
          _
      $region40: #{tpu_custom_call.1} parent=5 // pred_fallthru
        _
      %p460 = scmp.le.s32.totalorder 2, %s21
      // Predicated region
      $region61: #{tpu_custom_call.1} parent=5 // pred_check
        %p461 = pneg %p460
      $region62: #{tpu_custom_call.1} parent=5 // pred_check_branch
        %463 = sbr.rel (%p461) target = $region64
      $region63: #{tpu_custom_call.1} parent=5 // pred_region
        %s464 = ssub.s32 %s21, 2
        // Predicated region
        $region65: #{tpu_custom_call.1} parent=63 // pred_check
          %p465 = pneg %p196
        $region66: #{tpu_custom_call.1} parent=63 // pred_check_branch
          %467 = sbr.rel (%p465) target = $region68
        $region67: #{tpu_custom_call.1} parent=63 // pred_region
          %s468 = sand.u32 %s181, 1
          %s469 = scalar_lea.sflag [#allocation4], %s468
          %s470 = sand.u32 %s181, 1
          %s471 = smul.addr %s470, 8
          %s472 = scalar_lea.vmem [#allocation10], %s471
          %474 = dma.done %s469, 128
        $region68: #{tpu_custom_call.1} parent=63 // pred_fallthru
          _
      $region64: #{tpu_custom_call.1} parent=5 // pred_fallthru
        _
    $region6: #{tpu_custom_call.1} parent=1 // loop_footer
      %s25 = sadd.s32 1, %s21
    $region7: #{tpu_custom_call.1} parent=1 // loop_footer_branch
      %20 = sbr.rel target = $region3
    $region8: #{tpu_custom_call.1} parent=1 // loop_exit
      _
    %475 = vsyncpa [#allocation3], 1
    %s476 = scalar_lea.sflag [#allocation3], 1
    %477 = vsyncpa %s476, 1
    %478 = vsyncpa [#allocation6], 1
    %s479 = scalar_lea.sflag [#allocation6], 1
    %480 = vsyncpa %s479, 1
    %481 = vsyncpa [#allocation9], 1
    %482 = vsyncpa [#allocation4], 1
    %s483 = scalar_lea.sflag [#allocation4], 1
    %484 = vsyncpa %s483, 1

</llo_original>
